<compile_context>
chip_gen: v6e
topology: v6e:2x2x1
jax: 0.10.0
libtpu: 0.0.40
codegen_flags: <defaults>
</compile_context>

<pallas_src>
import math

import jax
import jax.numpy as jnp
from jax.experimental import pallas as pl
from jax.experimental.pallas import tpu as pltpu


def _round_up(x: int, m: int) -> int:
    return (x + m - 1) // m * m


def attention_kernel(x_ref, w_ref, b_ref, o_ref):
    """One batch tile: linear -> leaky_relu -> per-row softmax -> gate.

    x_ref: (tm, K)  input rows (padded feature lanes, if any, are zero)
    w_ref: (K, N)   pre-transposed weight (resident across the batch grid)
    b_ref: (1, N)   bias; padded lanes hold -1e30 so they vanish in the softmax
    """
    x = x_ref[...]
    w = w_ref[...]
    b = b_ref[...]

    # MXU-native (M,K)x(K,N) matmul, f32 accumulation; bias add in f32.
    y = jnp.dot(x, w, preferred_element_type=jnp.float32) + b.astype(jnp.float32)

    # leaky_relu, PyTorch default negative_slope = 0.01.
    a = jnp.where(y > 0, y, 0.01 * y)

    # Numerically stable per-row softmax (flattened per-sample view == axis 1 here).
    # Padded lanes carry bias -1e30 -> leaky_relu gives -1e28 -> exp underflows to 0,
    # so no per-tile iota mask is needed.
    m = jnp.max(a, axis=1, keepdims=True)
    e = jnp.exp(a - m)
    s = jnp.sum(e, axis=1, keepdims=True)
    a = e * pl.reciprocal(s, approx=True)     # EUP vrcp; frees VALU slots

    # Gate the input. Padded x lanes are zero, so padded outputs are zero as well;
    # padded batch rows (all-zero x) produce garbage-but-finite values and are sliced
    # off in the wrapper.
    o_ref[...] = (x.astype(jnp.float32) * a).astype(o_ref.dtype)


def attention_forward(x, w, b, *, tm=None):
    """x: (B, F); w: (F, F) in PyTorch (out, in) layout; b: (F,)."""
    B, F_in = x.shape
    F_out, F_in_w = w.shape
    assert F_in == F_in_w, "weight in_features mismatch"
    assert F_out == F_in, "gate x*a requires out_features == in_features (as in the module)"

    LANE, SUB = 128, 8
    Fp = _round_up(F_in, LANE)                 # lane-dense feature axis (in == out)

    if tm is None:
        # Big tiles amortize the ~0.35 us/grid-step overhead and push toward the HBM
        # roofline; 512 is a multiple of 256 (v6e/v7x MXU M dim) and 128 (v5e) and
        # keeps >= 2 grid steps for B >= 1024 (v7x megacore sharding). Small batches
        # get a single full-batch tile.
        tm = 512 if B >= 1024 else _round_up(B, SUB)
    tm = max(SUB, _round_up(tm, SUB))
    Bp = _round_up(B, tm)

    pad_f = Fp != F_in
    pad_b = Bp != B

    # Pre-transpose W once in the wrapper -> plain (M,K)x(K,N) contraction in-kernel.
    wt = w.T                                            # (F_in, F_out)
    if pad_f:
        wp = jnp.zeros((Fp, Fp), w.dtype).at[:F_in, :F_out].set(wt)
        # Fold the softmax padding mask into the bias (large finite negative).
        bp = jnp.full((1, Fp), -1e30, dtype=b.dtype).at[0, :F_out].set(b)
    else:
        wp = wt
        bp = b.reshape(1, Fp)
    # Aligned fast path: no pad / unpad HBM copies when shapes already fit the tiling.
    xp = (jnp.zeros((Bp, Fp), x.dtype).at[:B, :F_in].set(x)
          if (pad_b or pad_f) else x)

    # --- VMEM budgeting --------------------------------------------------------
    x_bytes = jnp.dtype(x.dtype).itemsize
    w_bytes = jnp.dtype(w.dtype).itemsize
    weight_bytes = Fp * Fp * w_bytes
    # Constant index_map => double-buffering the resident weight only wastes VMEM
    # (critical on v7x's 64 MiB); single-buffer it once it is big enough to matter.
    w_spec_kwargs = {}
    w_buffers = 2
    if weight_bytes > (4 << 20):
        w_spec_kwargs = dict(pipeline_mode=pl.Buffered(1))
        w_buffers = 1

    est_vmem = (4 * tm * Fp * x_bytes                    # x + out tiles, 2 buffers each
                + w_buffers * weight_bytes               # resident weight
                + 2 * Fp * jnp.dtype(b.dtype).itemsize   # bias
                + 2 * tm * Fp * 4)                       # f32 intermediates headroom

    compiler_kwargs = dict(dimension_semantics=("parallel",))   # rows independent
    if est_vmem > (32 << 20):
        # The scoped default (16 MiB v5e / 32 MiB v6e,v7x), not physical VMEM, is what
        # OOMs first for mid-size F; raise it before shrinking tiles.
        compiler_kwargs["vmem_limit_bytes"] = int(min(est_vmem + (4 << 20), 128 << 20))

    grid = (Bp // tm,)
    out = pl.pallas_call(
        attention_kernel,
        out_shape=jax.ShapeDtypeStruct((Bp, Fp), x.dtype),
        grid=grid,
        in_specs=[
            pl.BlockSpec((tm, Fp), lambda i: (i, 0)),                   # x: batch-tiled
            pl.BlockSpec((Fp, Fp), lambda i: (0, 0), **w_spec_kwargs),  # W^T: resident
            pl.BlockSpec((1, Fp), lambda i: (0, 0)),                    # bias: resident
        ],
        out_specs=pl.BlockSpec((tm, Fp), lambda i: (i, 0)),
        compiler_params=pltpu.CompilerParams(**compiler_kwargs),
    )(xp, wp, bp)

    if pad_b or pad_f:
        out = out[:B, :F_out]
    return out


def reference_forward(x, w, b):
    """Pure-JAX reference mirroring the PyTorch module exactly."""
    y = x @ w.T + b
    a = jnp.where(y > 0, y, 0.01 * y)
    a = jax.nn.softmax(a.reshape(a.shape[0], -1), axis=1).reshape(a.shape)
    return x * a


if __name__ == "__main__":
    # Small shapes consistent with the module: batch=64, in_channels=out_channels=32.
    B, F = 64, 32
    kx, kw, kb = jax.random.split(jax.random.PRNGKey(0), 3)
    x = jax.random.normal(kx, (B, F), dtype=jnp.float32)
    bound = 1.0 / math.sqrt(F)      # PyTorch default Linear init range
    w = jax.random.uniform(kw, (F, F), minval=-bound, maxval=bound, dtype=jnp.float32)
    b = jax.random.uniform(kb, (F,), minval=-bound, maxval=bound, dtype=jnp.float32)

    ref = reference_forward(x, w, b)

    # 1) Default tile (single batch tile), padded-feature path (32 -> 128 lanes,
    #    mask folded into the bias). Tolerance loosened vs 1e-5 for the approx (EUP)
    #    reciprocal.
    out = jax.block_until_ready(attention_forward(x, w, b))
    assert out.shape == ref.shape
    assert jnp.allclose(out, ref, atol=1e-3, rtol=1e-3), (
        f"default-tm mismatch: max abs diff = {float(jnp.max(jnp.abs(out - ref)))}")

    # 2) tm=32 -> grid=(2,): exercises the pipelined multi-step batch grid.
    out2 = jax.block_until_ready(attention_forward(x, w, b, tm=32))
    assert jnp.allclose(out2, ref, atol=1e-3, rtol=1e-3), (
        f"tiled mismatch: max abs diff = {float(jnp.max(jnp.abs(out2 - ref)))}")

    # 3) bf16 storage (halves HBM traffic; accumulation + softmax epilogue stay f32).
    xb, wb, bb = (x.astype(jnp.bfloat16), w.astype(jnp.bfloat16), b.astype(jnp.bfloat16))
    out_bf = jax.block_until_ready(attention_forward(xb, wb, bb))
    ref_bf = reference_forward(xb.astype(jnp.float32), wb.astype(jnp.float32),
                               bb.astype(jnp.float32))
    assert jnp.allclose(out_bf.astype(jnp.float32), ref_bf, atol=5e-3, rtol=5e-2), (
        "bf16 mismatch: max abs diff = "
        f"{float(jnp.max(jnp.abs(out_bf.astype(jnp.float32) - ref_bf)))}")

    # 4) Lane/batch-aligned shapes: exercises the no-pad / no-slice fast path.
    B2, F2 = 256, 128
    k2x, k2w, k2b = jax.random.split(jax.random.PRNGKey(1), 3)
    x2 = jax.random.normal(k2x, (B2, F2), dtype=jnp.float32)
    bnd2 = 1.0 / math.sqrt(F2)
    w2 = jax.random.uniform(k2w, (F2, F2), minval=-bnd2, maxval=bnd2, dtype=jnp.float32)
    b2 = jax.random.uniform(k2b, (F2,), minval=-bnd2, maxval=bnd2, dtype=jnp.float32)
    out_al = jax.block_until_ready(attention_forward(x2, w2, b2))
    ref_al = reference_forward(x2, w2, b2)
    assert jnp.allclose(out_al, ref_al, atol=1e-3, rtol=1e-3), (
        f"aligned mismatch: max abs diff = {float(jnp.max(jnp.abs(out_al - ref_al)))}")

    print("KERNEL_OK")
</pallas_src>

<mosaic_0001>
module attributes {stable_mosaic.version = 11 : i64} {
  func.func @attention_kernel(%arg0: i32, %arg1: memref<64x128xf32, #tpu.memory_space<vmem>>, %arg2: memref<128x128xf32, #tpu.memory_space<vmem>>, %arg3: memref<1x128xf32, #tpu.memory_space<vmem>>, %arg4: memref<64x128xf32, #tpu.memory_space<vmem>>) attributes {dimension_semantics = [#tpu.dimension_semantics<parallel>], iteration_bounds = array<i64: 1>, scalar_prefetch = 0 : i64, scratch_operands = 0 : i64, tpu.core_type = #tpu.core_type<tc>, window_params = [{transform_indices = @transform_0, window_bounds = array<i64: 64, 128>}, {pipeline_mode = #tpu.pipeline_mode<synchronous>, transform_indices = @transform_1, window_bounds = array<i64: 128, 128>}, {pipeline_mode = #tpu.pipeline_mode<synchronous>, transform_indices = @transform_2, window_bounds = array<i64: 1, 128>}, {transform_indices = @transform_3, window_bounds = array<i64: 64, 128>}]} {
    %c0 = arith.constant 0 : index
    %c0_0 = arith.constant 0 : index
    %0 = vector.load %arg1[%c0, %c0_0] : memref<64x128xf32, #tpu.memory_space<vmem>>, vector<64x128xf32>
    %c0_1 = arith.constant 0 : index
    %c0_2 = arith.constant 0 : index
    %1 = vector.load %arg2[%c0_1, %c0_2] : memref<128x128xf32, #tpu.memory_space<vmem>>, vector<128x128xf32>
    %c0_3 = arith.constant 0 : index
    %c0_4 = arith.constant 0 : index
    %2 = vector.load %arg3[%c0_3, %c0_4] : memref<1x128xf32, #tpu.memory_space<vmem>>, vector<1x128xf32>
    %cst = arith.constant dense<0.000000e+00> : vector<64x128xf32>
    %3 = tpu.matmul %0, %1, %cst {dimension_numbers = #tpu.dot_dimension_numbers<[1], [0], [0], [1], [0, 0, 1, 1], [], []>} : vector<64x128xf32>, vector<128x128xf32>, vector<64x128xf32> -> vector<64x128xf32>
    %4 = vector.broadcast %2 : vector<1x128xf32> to vector<64x128xf32>
    %5 = arith.addf %3, %4 : vector<64x128xf32>
    %cst_5 = arith.constant 0.000000e+00 : f32
    %6 = vector.broadcast %cst_5 : f32 to vector<64x128xf32>
    %7 = arith.cmpf ogt, %5, %6 : vector<64x128xf32>
    %cst_6 = arith.constant 0.00999999977 : f32
    %8 = vector.broadcast %cst_6 : f32 to vector<64x128xf32>
    %9 = arith.mulf %8, %5 : vector<64x128xf32>
    %10 = arith.select %7, %5, %9 : vector<64x128xi1>, vector<64x128xf32>
    %cst_7 = arith.constant dense<0xFF800000> : vector<64xf32>
    %11 = vector.multi_reduction <maximumf>, %10, %cst_7 [1] : vector<64x128xf32> to vector<64xf32>
    %12 = vector.shape_cast %11 : vector<64xf32> to vector<64x1xf32>
    %13 = vector.broadcast %12 : vector<64x1xf32> to vector<64x128xf32>
    %14 = arith.subf %10, %13 : vector<64x128xf32>
    %15 = math.exp %14 : vector<64x128xf32>
    %cst_8 = arith.constant dense<0.000000e+00> : vector<64xf32>
    %16 = vector.multi_reduction <add>, %15, %cst_8 [1] : vector<64x128xf32> to vector<64xf32>
    %17 = vector.shape_cast %16 : vector<64xf32> to vector<64x1xf32>
    %18 = tpu.reciprocal %17 {approx = true} : vector<64x1xf32> -> vector<64x1xf32>
    %19 = vector.broadcast %18 : vector<64x1xf32> to vector<64x128xf32>
    %20 = arith.mulf %15, %19 : vector<64x128xf32>
    %21 = arith.mulf %0, %20 : vector<64x128xf32>
    %c0_9 = arith.constant 0 : index
    %c0_10 = arith.constant 0 : index
    %22 = vector.load %arg4[%c0_9, %c0_10] : memref<64x128xf32, #tpu.memory_space<vmem>>, vector<64x128xf32>
    tpu.vector_store %arg4[%c0_9, %c0_10], %21 {strides = array<i32>} : memref<64x128xf32, #tpu.memory_space<vmem>>, vector<64x128xf32>,
    return
  }
  func.func @transform_0(%arg0: i32) -> (i32, i32) {
    %c0_i32 = arith.constant 0 : i32
    %c0_i32_0 = arith.constant 0 : i32
    return %arg0, %c0_i32 : i32, i32
  }
  func.func @transform_1(%arg0: i32) -> (i32, i32) {
    %c0_i32 = arith.constant 0 : i32
    %c0_i32_0 = arith.constant 0 : i32
    %c0_i32_1 = arith.constant 0 : i32
    return %c0_i32, %c0_i32_0 : i32, i32
  }
  func.func @transform_2(%arg0: i32) -> (i32, i32) {
    %c0_i32 = arith.constant 0 : i32
    %c0_i32_0 = arith.constant 0 : i32
    %c0_i32_1 = arith.constant 0 : i32
    return %c0_i32, %c0_i32_0 : i32, i32
  }
  func.func @transform_3(%arg0: i32) -> (i32, i32) {
    %c0_i32 = arith.constant 0 : i32
    %c0_i32_0 = arith.constant 0 : i32
    return %arg0, %c0_i32 : i32, i32
  }
}

</mosaic_0001>

<llo_original>
// kernel: tpu_custom_call.1
$region0: #{tpu_custom_call.1}
  #allocation0 [shape = 'u32[]', space=smem, size = 0x4, offset = 0x4, fixed_abs, tag = 'smem constant byte address 0x4 - core index']
  #allocation1 [shape = 'u32[144,128]{1,0:T(1,128)}', space=vmem, size = 0x12000, scoped, tag = 'internal scratch']
  %s0 = inlined_call_operand.hbm [shape: f32[64,128], index: 0, kind: input, shape index: {}]
  %s1 = inlined_call_operand.hbm [shape: f32[128,128], index: 1, kind: input, shape index: {}]
  %s2 = inlined_call_operand.vmem [shape: f32[1,128], index: 2, kind: input, shape index: {}]
  %s3 = inlined_call_operand.hbm [shape: f32[64,128], index: 3, kind: output, shape index: {}]
  %s4 = sld [smem:[#allocation0]]
  $region30: #{tpu_custom_call.1} parent=0
    _
  %s6 = ssub.s32 1, %s4
  %s7 = scalar_select 0, %s6, %s4
  $region1: #{tpu_custom_call.1} parent=0
    #allocation2 [shape = 'u8[32768]{0}', space=vmem, size = 0x8000, scoped, tag = 'input window, operand 0, single buffered']
    #allocation3 [shape = 's32[1]{0}', space=sflag, size = 0x4, scoped, tag = 'scoped memory for tpu_custom_call.1']
    #allocation4 [shape = 's32[1]{0}', space=sflag, size = 0x4, scoped, tag = 'scoped memory for tpu_custom_call.1']
    #allocation5 [shape = 'u8[65536]{0}', space=vmem, size = 0x10000, scoped, tag = 'input window, operand 1, single buffered']
    #allocation6 [shape = 's32[1]{0}', space=sflag, size = 0x4, scoped, tag = 'scoped memory for tpu_custom_call.1']
    #allocation7 [shape = 'u8[32768]{0}', space=vmem, size = 0x8000, scoped, tag = 'output window, operand 0, single buffered']
    %8 = vsyncpa [#allocation3], 0
    %9 = vsyncpa [#allocation6], 0
    %10 = vsyncpa [#allocation4], 0
    // Predicated region
    $region2: #{tpu_custom_call.1} parent=1 // pred_check
      _
    $region3: #{tpu_custom_call.1} parent=1 // pred_check_branch
      %12 = sbr.rel (0) target = $region5
    $region4: #{tpu_custom_call.1} parent=1 // pred_region
      %s14 = ssub.s32 1024, 1024
      %15 = vsyncadd [#allocation3], %s14
      %s16 = sshll.u32 [#allocation2], 4
      %s17 = int_to_ptr.vmem [resolvable:$true] %s16
      %22 = dma.hbm_to_vmem [thread:$0]  %s0, 1024, %s17, [#allocation3], 128, 128, 8
    $region5: #{tpu_custom_call.1} parent=1 // pred_fallthru
      _
    // Predicated region
    $region6: #{tpu_custom_call.1} parent=1 // pred_check
      _
    $region7: #{tpu_custom_call.1} parent=1 // pred_check_branch
      %24 = sbr.rel (0) target = $region9
    $region8: #{tpu_custom_call.1} parent=1 // pred_region
      %s26 = ssub.s32 2048, 2048
      %27 = vsyncadd [#allocation6], %s26
      %s28 = sshll.u32 [#allocation5], 4
      %s29 = int_to_ptr.vmem [resolvable:$true] %s28
      %34 = dma.hbm_to_vmem [thread:$0]  %s1, 2048, %s29, [#allocation6], 128, 128, 8
    $region9: #{tpu_custom_call.1} parent=1 // pred_fallthru
      _
    // Predicated region
    $region10: #{tpu_custom_call.1} parent=1 // pred_check
      _
    $region11: #{tpu_custom_call.1} parent=1 // pred_check_branch
      %36 = sbr.rel (0) target = $region13
    $region12: #{tpu_custom_call.1} parent=1 // pred_region
      _
    $region13: #{tpu_custom_call.1} parent=1 // pred_fallthru
      _
    // Predicated region
    $region14: #{tpu_custom_call.1} parent=1 // pred_check
      _
    $region15: #{tpu_custom_call.1} parent=1 // pred_check_branch
      %38 = sbr.rel (0) target = $region17
    $region16: #{tpu_custom_call.1} parent=1 // pred_region
      %39 = dma.done [#allocation3], 1024
    $region17: #{tpu_custom_call.1} parent=1 // pred_fallthru
      _
    // Predicated region
    $region18: #{tpu_custom_call.1} parent=1 // pred_check
      _
    $region19: #{tpu_custom_call.1} parent=1 // pred_check_branch
      %41 = sbr.rel (0) target = $region21
    $region20: #{tpu_custom_call.1} parent=1 // pred_region
      %42 = dma.done [#allocation6], 2048
    $region21: #{tpu_custom_call.1} parent=1 // pred_fallthru
      _
    %v43 = vld [vmem:[#allocation2] sm:$0xff]
    %v44 = vld [vmem:[#allocation2 + $0x8] sm:$0xff]
    %v45 = vld [vmem:[#allocation2 + $0x10] sm:$0xff]
    %v46 = vld [vmem:[#allocation2 + $0x18] sm:$0xff]
    %v47 = vld [vmem:[#allocation2 + $0x20] sm:$0xff]
    %v48 = vld [vmem:[#allocation2 + $0x28] sm:$0xff]
    %v49 = vld [vmem:[#allocation2 + $0x30] sm:$0xff]
    %v50 = vld [vmem:[#allocation2 + $0x38] sm:$0xff]
    %v51 = vld [vmem:[#allocation5] sm:$0xff]
    %v52 = vld [vmem:[#allocation5 + $0x8] sm:$0xff]
    %v53 = vld [vmem:[#allocation5 + $0x10] sm:$0xff]
    %v54 = vld [vmem:[#allocation5 + $0x18] sm:$0xff]
    %v55 = vld [vmem:[#allocation5 + $0x20] sm:$0xff]
    %v56 = vld [vmem:[#allocation5 + $0x28] sm:$0xff]
    %v57 = vld [vmem:[#allocation5 + $0x30] sm:$0xff]
    %v58 = vld [vmem:[#allocation5 + $0x38] sm:$0xff]
    %v59 = vld [vmem:[#allocation5 + $0x40] sm:$0xff]
    %v60 = vld [vmem:[#allocation5 + $0x48] sm:$0xff]
    %v61 = vld [vmem:[#allocation5 + $0x50] sm:$0xff]
    %v62 = vld [vmem:[#allocation5 + $0x58] sm:$0xff]
    %v63 = vld [vmem:[#allocation5 + $0x60] sm:$0xff]
    %v64 = vld [vmem:[#allocation5 + $0x68] sm:$0xff]
    %v65 = vld [vmem:[#allocation5 + $0x70] sm:$0xff]
    %v66 = vld [vmem:[#allocation5 + $0x78] sm:$0xff]
    %v67 = vld [vmem:[%s2] sm:$0x1]
    %v69 = vlaneseq
    %v70 = vshrl.u32 %v69, 7
    %v71 = vsub.s32 0, %v70
    %v72 = vrot.slane %v67, %v71
    %74 = vmatprep.subr.mxu0 0.0
    %75 = vmatpush1.msra.mxu0 %v66
    %76 = vmatprep.subr.mxu0 0.0
    %77 = vmatpush1.msra.mxu0 %v65
    %78 = vmatprep.subr.mxu0 0.0
    %79 = vmatpush1.msra.mxu0 %v64
    %80 = vmatprep.subr.mxu0 0.0
    %81 = vmatpush1.msra.mxu0 %v63
    %82 = vmatprep.subr.mxu0 0.0
    %83 = vmatpush1.msra.mxu0 %v62
    %84 = vmatprep.subr.mxu0 0.0
    %85 = vmatpush1.msra.mxu0 %v61
    %86 = vmatprep.subr.mxu0 0.0
    %87 = vmatpush1.msra.mxu0 %v60
    %88 = vmatprep.subr.mxu0 0.0
    %89 = vmatpush1.msra.mxu0 %v59
    %90 = vmatprep.subr.mxu0 0.0
    %91 = vmatpush1.msra.mxu0 %v58
    %92 = vmatprep.subr.mxu0 0.0
    %93 = vmatpush1.msra.mxu0 %v57
    %94 = vmatprep.subr.mxu0 0.0
    %95 = vmatpush1.msra.mxu0 %v56
    %96 = vmatprep.subr.mxu0 0.0
    %97 = vmatpush1.msra.mxu0 %v55
    %98 = vmatprep.subr.mxu0 0.0
    %99 = vmatpush1.msra.mxu0 %v54
    %100 = vmatprep.subr.mxu0 0.0
    %101 = vmatpush1.msra.mxu0 %v53
    %102 = vmatprep.subr.mxu0 0.0
    %103 = vmatpush1.msra.mxu0 %v52
    %104 = vmatprep.subr.mxu0 0.0
    %105 = vmatpush1.msra.mxu0 %v51
    %106 = vmatprep.subr.mxu0 0.0
    %107 = vmatpush2.msra.mxu0 0.0
    %108 = vmatprep.subr.mxu0 0.0
    %109 = vmatpush2.msra.mxu0 0.0
    %110 = vmatprep.subr.mxu0 0.0
    %111 = vmatpush2.msra.mxu0 0.0
    %112 = vmatprep.subr.mxu0 0.0
    %113 = vmatpush2.msra.mxu0 0.0
    %114 = vmatprep.subr.mxu0 0.0
    %115 = vmatpush2.msra.mxu0 0.0
    %116 = vmatprep.subr.mxu0 0.0
    %117 = vmatpush2.msra.mxu0 0.0
    %118 = vmatprep.subr.mxu0 0.0
    %119 = vmatpush2.msra.mxu0 0.0
    %120 = vmatprep.subr.mxu0 0.0
    %121 = vmatpush2.msra.mxu0 0.0
    %122 = vmatprep.subr.mxu0 0.0
    %123 = vmatpush2.msra.mxu0 0.0
    %124 = vmatprep.subr.mxu0 0.0
    %125 = vmatpush2.msra.mxu0 0.0
    %126 = vmatprep.subr.mxu0 0.0
    %127 = vmatpush2.msra.mxu0 0.0
    %128 = vmatprep.subr.mxu0 0.0
    %129 = vmatpush2.msra.mxu0 0.0
    %130 = vmatprep.subr.mxu0 0.0
    %131 = vmatpush2.msra.mxu0 0.0
    %132 = vmatprep.subr.mxu0 0.0
    %133 = vmatpush2.msra.mxu0 0.0
    %134 = vmatprep.subr.mxu0 0.0
    %135 = vmatpush2.msra.mxu0 0.0
    %136 = vmatprep.subr.mxu0 0.0
    %137 = vmatpush2.msra.mxu0 0.0
    %138 = vmatprep.mubr.f32.mxu0 0.0
    %139 = vmatmul.mubr.f32.gmra.mxu0 %v43
    %v140 = vpop.f32.mrf.mxu0
    %v141 = vadd.f32 %v72, %v140
    %v142 = vpop.f32.mrf.mxu0
    %143 = vmatprep.mubr.f32.mxu0 0.0
    %144 = vmatmul.mubr.f32.gmra.mxu0 %v44
    %v145 = vpop.f32.mrf.mxu0
    %v146 = vadd.f32 %v72, %v145
    %v147 = vpop.f32.mrf.mxu0
    %148 = vmatprep.mubr.f32.mxu0 0.0
    %149 = vmatmul.mubr.f32.gmra.mxu0 %v45
    %v150 = vpop.f32.mrf.mxu0
    %v151 = vadd.f32 %v72, %v150
    %v152 = vpop.f32.mrf.mxu0
    %153 = vmatprep.mubr.f32.mxu0 0.0
    %154 = vmatmul.mubr.f32.gmra.mxu0 %v46
    %v155 = vpop.f32.mrf.mxu0
    %v156 = vadd.f32 %v72, %v155
    %v157 = vpop.f32.mrf.mxu0
    %158 = vmatprep.mubr.f32.mxu0 0.0
    %159 = vmatmul.mubr.f32.gmra.mxu0 %v47
    %v160 = vpop.f32.mrf.mxu0
    %v161 = vadd.f32 %v72, %v160
    %v162 = vpop.f32.mrf.mxu0
    %163 = vmatprep.mubr.f32.mxu0 0.0
    %164 = vmatmul.mubr.f32.gmra.mxu0 %v48
    %v165 = vpop.f32.mrf.mxu0
    %v166 = vadd.f32 %v72, %v165
    %v167 = vpop.f32.mrf.mxu0
    %168 = vmatprep.mubr.f32.mxu0 0.0
    %169 = vmatmul.mubr.f32.gmra.mxu0 %v49
    %v170 = vpop.f32.mrf.mxu0
    %v171 = vadd.f32 %v72, %v170
    %v172 = vpop.f32.mrf.mxu0
    %173 = vmatprep.mubr.f32.mxu0 0.0
    %174 = vmatmul.mubr.f32.gmra.mxu0 %v50
    %v175 = vpop.f32.mrf.mxu0
    %v176 = vadd.f32 %v72, %v175
    %v177 = vpop.f32.mrf.mxu0
    %178 = vdwg.mxu0
    %vm179 = vcmp.gt.f32.partialorder %v141, 0.0
    %vm180 = vcmp.gt.f32.partialorder %v146, 0.0
    %vm181 = vcmp.gt.f32.partialorder %v151, 0.0
    %vm182 = vcmp.gt.f32.partialorder %v156, 0.0
    %vm183 = vcmp.gt.f32.partialorder %v161, 0.0
    %vm184 = vcmp.gt.f32.partialorder %v166, 0.0
    %vm185 = vcmp.gt.f32.partialorder %v171, 0.0
    %vm186 = vcmp.gt.f32.partialorder %v176, 0.0
    %v187 = vmul.f32 %v141, 0.01
    %v188 = vmul.f32 %v146, 0.01
    %v189 = vmul.f32 %v151, 0.01
    %v190 = vmul.f32 %v156, 0.01
    %v191 = vmul.f32 %v161, 0.01
    %v192 = vmul.f32 %v166, 0.01
    %v193 = vmul.f32 %v171, 0.01
    %v194 = vmul.f32 %v176, 0.01
    %v195 = vsel %vm179, %v141, %v187
    %v196 = vsel %vm180, %v146, %v188
    %v197 = vsel %vm181, %v151, %v189
    %v198 = vsel %vm182, %v156, %v190
    %v199 = vsel %vm183, %v161, %v191
    %v200 = vsel %vm184, %v166, %v192
    %v201 = vsel %vm185, %v171, %v193
    %v202 = vsel %vm186, %v176, %v194
    %203 = vmax.xlane.f32.xlu0 %v195
    %v204 = vpop.xlane.xlu0 %203
    %205 = vmax.xlane.f32.xlu0 %v196
    %v206 = vpop.xlane.xlu0 %205
    %207 = vmax.xlane.f32.xlu0 %v197
    %v208 = vpop.xlane.xlu0 %207
    %209 = vmax.xlane.f32.xlu0 %v198
    %v210 = vpop.xlane.xlu0 %209
    %211 = vmax.xlane.f32.xlu0 %v199
    %v212 = vpop.xlane.xlu0 %211
    %213 = vmax.xlane.f32.xlu0 %v200
    %v214 = vpop.xlane.xlu0 %213
    %215 = vmax.xlane.f32.xlu0 %v201
    %v216 = vpop.xlane.xlu0 %215
    %217 = vmax.xlane.f32.xlu0 %v202
    %v218 = vpop.xlane.xlu0 %217
    %v219 = vsub.f32 %v195, %v204
    %v220 = vsub.f32 %v196, %v206
    %v221 = vsub.f32 %v197, %v208
    %v222 = vsub.f32 %v198, %v210
    %v223 = vsub.f32 %v199, %v212
    %v224 = vsub.f32 %v200, %v214
    %v225 = vsub.f32 %v201, %v216
    %v226 = vsub.f32 %v202, %v218
    %v227 = vmul.f32 %v219, 1.442695
    %v228 = vpow.pop %v227
    %v229 = vmul.f32 %v220, 1.442695
    %v230 = vpow.pop %v229
    %v231 = vmul.f32 %v221, 1.442695
    %v232 = vpow.pop %v231
    %v233 = vmul.f32 %v222, 1.442695
    %v234 = vpow.pop %v233
    %v235 = vmul.f32 %v223, 1.442695
    %v236 = vpow.pop %v235
    %v237 = vmul.f32 %v224, 1.442695
    %v238 = vpow.pop %v237
    %v239 = vmul.f32 %v225, 1.442695
    %v240 = vpow.pop %v239
    %v241 = vmul.f32 %v226, 1.442695
    %v242 = vpow.pop %v241
    %243 = vadd.xlane.f32.xlu0 %v228
    %v244 = vpop.xlane.xlu0 %243
    %245 = vadd.xlane.f32.xlu0 %v230
    %v246 = vpop.xlane.xlu0 %245
    %247 = vadd.xlane.f32.xlu0 %v232
    %v248 = vpop.xlane.xlu0 %247
    %249 = vadd.xlane.f32.xlu0 %v234
    %v250 = vpop.xlane.xlu0 %249
    %251 = vadd.xlane.f32.xlu0 %v236
    %v252 = vpop.xlane.xlu0 %251
    %253 = vadd.xlane.f32.xlu0 %v238
    %v254 = vpop.xlane.xlu0 %253
    %255 = vadd.xlane.f32.xlu0 %v240
    %v256 = vpop.xlane.xlu0 %255
    %257 = vadd.xlane.f32.xlu0 %v242
    %v258 = vpop.xlane.xlu0 %257
    %v259 = vrcp.pop %v244
    %v260 = vrcp.pop %v246
    %v261 = vrcp.pop %v248
    %v262 = vrcp.pop %v250
    %v263 = vrcp.pop %v252
    %v264 = vrcp.pop %v254
    %v265 = vrcp.pop %v256
    %v266 = vrcp.pop %v258
    %v267 = vmul.f32 %v228, %v259
    %v268 = vmul.f32 %v230, %v260
    %v269 = vmul.f32 %v232, %v261
    %v270 = vmul.f32 %v234, %v262
    %v271 = vmul.f32 %v236, %v263
    %v272 = vmul.f32 %v238, %v264
    %v273 = vmul.f32 %v240, %v265
    %v274 = vmul.f32 %v242, %v266
    %v275 = vmul.f32 %v43, %v267
    %v276 = vmul.f32 %v44, %v268
    %v277 = vmul.f32 %v45, %v269
    %v278 = vmul.f32 %v46, %v270
    %v279 = vmul.f32 %v47, %v271
    %v280 = vmul.f32 %v48, %v272
    %v281 = vmul.f32 %v49, %v273
    %v282 = vmul.f32 %v50, %v274
    %283 = vst [vmem:[#allocation7] sm:$0xff] %v275
    %284 = vst [vmem:[#allocation7 + $0x8] sm:$0xff] %v276
    %285 = vst [vmem:[#allocation7 + $0x10] sm:$0xff] %v277
    %286 = vst [vmem:[#allocation7 + $0x18] sm:$0xff] %v278
    %287 = vst [vmem:[#allocation7 + $0x20] sm:$0xff] %v279
    %288 = vst [vmem:[#allocation7 + $0x28] sm:$0xff] %v280
    %289 = vst [vmem:[#allocation7 + $0x30] sm:$0xff] %v281
    %290 = vst [vmem:[#allocation7 + $0x38] sm:$0xff] %v282
    // Predicated region
    $region22: #{tpu_custom_call.1} parent=1 // pred_check
      _
    $region23: #{tpu_custom_call.1} parent=1 // pred_check_branch
      %292 = sbr.rel (0) target = $region25
    $region24: #{tpu_custom_call.1} parent=1 // pred_region
      %s294 = ssub.s32 1024, 1024
      %295 = vsyncadd [#allocation4], %s294
      %s296 = sshll.u32 [#allocation7], 4
      %s297 = int_to_ptr.vmem [resolvable:$true] %s296
      %302 = dma.vmem_to_hbm [thread:$0]  %s297, 1024, %s3, [#allocation4], 128, 128, 8
    $region25: #{tpu_custom_call.1} parent=1 // pred_fallthru
      _
    // Predicated region
    $region26: #{tpu_custom_call.1} parent=1 // pred_check
      _
    $region27: #{tpu_custom_call.1} parent=1 // pred_check_branch
      %304 = sbr.rel (0) target = $region29
    $region28: #{tpu_custom_call.1} parent=1 // pred_region
      %305 = dma.done [#allocation4], 1024
    $region29: #{tpu_custom_call.1} parent=1 // pred_fallthru
      _
    %306 = vsyncpa [#allocation3], 1
    %307 = vsyncpa [#allocation6], 1
    %308 = vsyncpa [#allocation4], 1

</llo_original>
